<compile_context>
chip_gen: v5e
topology: v5e:2x2
jax: 0.10.0
libtpu: 0.0.40
codegen_flags: <defaults>
</compile_context>

<pallas_src>
import jax
import jax.numpy as jnp
from jax.experimental import pallas as pl
from jax.experimental.pallas import tpu as pltpu


def soft_q_kernel(x_ref, a_ref, w1o_ref, w1a_ref, b1_ref, w2_ref, b2_ref,
                  w3_ref, b3_ref, o_ref):
    # MXU operands in bf16, accumulation + epilogue in f32.
    x = x_ref[...].astype(jnp.bfloat16)
    a = a_ref[...].astype(jnp.bfloat16)

    # fc1 + ReLU :  h1 = x @ W1_obs + a @ W1_act + b1   (concat fused away)
    h1 = (jnp.dot(x, w1o_ref[...], preferred_element_type=jnp.float32)
          + jnp.dot(a, w1a_ref[...], preferred_element_type=jnp.float32)
          + b1_ref[...])
    h1 = jnp.maximum(h1, 0.0)

    # fc2 + ReLU :  (TB, 256) @ (256, 256)
    h2 = jnp.dot(h1.astype(jnp.bfloat16), w2_ref[...],
                 preferred_element_type=jnp.float32) + b2_ref[...]
    h2 = jnp.maximum(h2, 0.0)

    # fc3 : N=1 "matmul" as VPU multiply + XLU cross-lane sum (keeps MXU free).
    q = jnp.sum(h2 * w3_ref[...], axis=-1, keepdims=True) + b3_ref[0, 0]
    o_ref[...] = q


def soft_q_forward(x, a, params, *, max_tb=512):
    """x: (B, obs_dim) f32, a: (B, act_dim) f32 -> (B, 1) f32."""
    w1, b1, w2, b2, w3, b3 = params
    B, obs_dim = x.shape
    act_dim = a.shape[1]
    H = w1.shape[1]

    # Split fc1 weight so no (B, obs+act) concat is ever materialized.
    w1o = w1[:obs_dim].astype(jnp.bfloat16)          # (obs_dim, H)
    w1a = w1[obs_dim:].astype(jnp.bfloat16)          # (act_dim, H)
    w2b = w2.astype(jnp.bfloat16)                    # (H, H)
    w3_row = w3.reshape(1, H).astype(jnp.float32)    # (1, H) row for VPU fc3
    b3_s = b3.reshape(1, 1).astype(jnp.float32)      # scalar via SMEM

    # Batch tile: full batch for small B, 512-row tiles (pipelined) otherwise.
    TB = B if B <= max_tb else max_tb
    grid = (pl.cdiv(B, TB),)

    const = lambda i: (0, 0)   # weights / biases stay resident across the grid
    batch = lambda i: (i, 0)

    return pl.pallas_call(
        soft_q_kernel,
        out_shape=jax.ShapeDtypeStruct((B, 1), jnp.float32),
        grid=grid,
        in_specs=[
            pl.BlockSpec((TB, obs_dim), batch),                  # x
            pl.BlockSpec((TB, act_dim), batch),                  # a
            pl.BlockSpec((obs_dim, H), const),                   # W1_obs (bf16)
            pl.BlockSpec((act_dim, H), const),                   # W1_act (bf16)
            pl.BlockSpec((1, H), const),                         # b1 (f32)
            pl.BlockSpec((H, H), const),                         # W2 (bf16)
            pl.BlockSpec((1, H), const),                         # b2 (f32)
            pl.BlockSpec((1, H), const),                         # w3 row (f32)
            pl.BlockSpec(memory_space=pltpu.MemorySpace.SMEM),   # b3 scalar
        ],
        out_specs=pl.BlockSpec((TB, 1), batch),
        compiler_params=pltpu.CompilerParams(
            dimension_semantics=("parallel",)),
    )(x, a, w1o, w1a, b1, w2b, b2, w3_row, b3_s)


def init_params(key, obs_dim, act_dim, hidden=256):
    """Deterministic init mirroring torch.nn.Linear default:
    U(-1/sqrt(fan_in), 1/sqrt(fan_in)) for weights and biases."""
    d_in = obs_dim + act_dim
    ks = jax.random.split(key, 6)

    def linear(kw, kb, fan_in, fan_out):
        bound = 1.0 / jnp.sqrt(jnp.float32(fan_in))
        # stored as (in, out)  ==  torch weight (out, in) transposed
        w = jax.random.uniform(kw, (fan_in, fan_out), jnp.float32, -bound, bound)
        b = jax.random.uniform(kb, (1, fan_out), jnp.float32, -bound, bound)
        return w, b

    w1, b1 = linear(ks[0], ks[1], d_in, hidden)
    w2, b2 = linear(ks[2], ks[3], hidden, hidden)
    w3, b3 = linear(ks[4], ks[5], hidden, 1)
    return (w1, b1, w2, b2, w3, b3)


def soft_q_reference(x, a, params):
    """Pure-JAX f32 reference of the PyTorch forward."""
    w1, b1, w2, b2, w3, b3 = params
    xa = jnp.concatenate([x, a], axis=1)
    h1 = jnp.maximum(xa @ w1 + b1, 0.0)
    h2 = jnp.maximum(h1 @ w2 + b2, 0.0)
    return h2 @ w3 + b3


if __name__ == "__main__":
    # Small shapes consistent with a continuous-control env:
    # batch=2, obs_dim=8, act_dim=4  ->  fc1 input dim = 12.
    B, OBS, ACT = 2, 8, 4

    key = jax.random.PRNGKey(0)
    kx, ka, kp = jax.random.split(key, 3)
    x = jax.random.normal(kx, (B, OBS), jnp.float32)
    a = jax.random.normal(ka, (B, ACT), jnp.float32)
    params = init_params(kp, OBS, ACT)

    q = soft_q_forward(x, a, params)
    q = jax.block_until_ready(q)

    q_ref = soft_q_reference(x, a, params)
    assert q.shape == (B, 1)
    # bf16 MXU operands (f32 accumulation) => relaxed tolerance vs f32 reference.
    assert jnp.allclose(q, q_ref, atol=3e-2, rtol=3e-2), (q, q_ref)

    print("KERNEL_OK")
</pallas_src>

<mosaic_0001>
module attributes {stable_mosaic.version = 11 : i64} {
  func.func @soft_q_kernel(%arg0: i32, %arg1: memref<2x8xf32, #tpu.memory_space<vmem>>, %arg2: memref<2x4xf32, #tpu.memory_space<vmem>>, %arg3: memref<8x256xbf16, #tpu.memory_space<vmem>>, %arg4: memref<4x256xbf16, #tpu.memory_space<vmem>>, %arg5: memref<1x256xf32, #tpu.memory_space<vmem>>, %arg6: memref<256x256xbf16, #tpu.memory_space<vmem>>, %arg7: memref<1x256xf32, #tpu.memory_space<vmem>>, %arg8: memref<1x256xf32, #tpu.memory_space<vmem>>, %arg9: memref<1x1xf32, #tpu.memory_space<smem>>, %arg10: memref<2x1xf32, #tpu.memory_space<vmem>>) attributes {dimension_semantics = [#tpu.dimension_semantics<parallel>], iteration_bounds = array<i64: 1>, scalar_prefetch = 0 : i64, scratch_operands = 0 : i64, tpu.core_type = #tpu.core_type<tc>, window_params = [{transform_indices = @transform_0, window_bounds = array<i64: 2, 8>}, {transform_indices = @transform_1, window_bounds = array<i64: 2, 4>}, {pipeline_mode = #tpu.pipeline_mode<synchronous>, transform_indices = @transform_2, window_bounds = array<i64: 8, 256>}, {pipeline_mode = #tpu.pipeline_mode<synchronous>, transform_indices = @transform_3, window_bounds = array<i64: 4, 256>}, {pipeline_mode = #tpu.pipeline_mode<synchronous>, transform_indices = @transform_4, window_bounds = array<i64: 1, 256>}, {pipeline_mode = #tpu.pipeline_mode<synchronous>, transform_indices = @transform_5, window_bounds = array<i64: 256, 256>}, {pipeline_mode = #tpu.pipeline_mode<synchronous>, transform_indices = @transform_6, window_bounds = array<i64: 1, 256>}, {pipeline_mode = #tpu.pipeline_mode<synchronous>, transform_indices = @transform_7, window_bounds = array<i64: 1, 256>}, {transform_indices = @transform_8, window_bounds = array<i64: 1, 1>}, {transform_indices = @transform_9, window_bounds = array<i64: 2, 1>}]} {
    %c0 = arith.constant 0 : index
    %c0_0 = arith.constant 0 : index
    %0 = vector.load %arg1[%c0, %c0_0] : memref<2x8xf32, #tpu.memory_space<vmem>>, vector<2x8xf32>
    %1 = arith.truncf %0 : vector<2x8xf32> to vector<2x8xbf16>
    %c0_1 = arith.constant 0 : index
    %c0_2 = arith.constant 0 : index
    %2 = vector.load %arg2[%c0_1, %c0_2] : memref<2x4xf32, #tpu.memory_space<vmem>>, vector<2x4xf32>
    %3 = arith.truncf %2 : vector<2x4xf32> to vector<2x4xbf16>
    %c0_3 = arith.constant 0 : index
    %c0_4 = arith.constant 0 : index
    %4 = vector.load %arg3[%c0_3, %c0_4] : memref<8x256xbf16, #tpu.memory_space<vmem>>, vector<8x256xbf16>
    %cst = arith.constant dense<0.000000e+00> : vector<2x256xf32>
    %5 = tpu.matmul %1, %4, %cst {dimension_numbers = #tpu.dot_dimension_numbers<[1], [0], [0], [1], [0, 0, 1, 1], [], []>} : vector<2x8xbf16>, vector<8x256xbf16>, vector<2x256xf32> -> vector<2x256xf32>
    %c0_5 = arith.constant 0 : index
    %c0_6 = arith.constant 0 : index
    %6 = vector.load %arg4[%c0_5, %c0_6] : memref<4x256xbf16, #tpu.memory_space<vmem>>, vector<4x256xbf16>
    %cst_7 = arith.constant dense<0.000000e+00> : vector<2x256xf32>
    %7 = tpu.matmul %3, %6, %cst_7 {dimension_numbers = #tpu.dot_dimension_numbers<[1], [0], [0], [1], [0, 0, 1, 1], [], []>} : vector<2x4xbf16>, vector<4x256xbf16>, vector<2x256xf32> -> vector<2x256xf32>
    %8 = arith.addf %5, %7 : vector<2x256xf32>
    %c0_8 = arith.constant 0 : index
    %c0_9 = arith.constant 0 : index
    %9 = vector.load %arg5[%c0_8, %c0_9] : memref<1x256xf32, #tpu.memory_space<vmem>>, vector<1x256xf32>
    %10 = vector.broadcast %9 : vector<1x256xf32> to vector<2x256xf32>
    %11 = arith.addf %8, %10 : vector<2x256xf32>
    %cst_10 = arith.constant 0.000000e+00 : f32
    %12 = vector.broadcast %cst_10 : f32 to vector<2x256xf32>
    %13 = arith.maximumf %11, %12 : vector<2x256xf32>
    %14 = arith.truncf %13 : vector<2x256xf32> to vector<2x256xbf16>
    %c0_11 = arith.constant 0 : index
    %c0_12 = arith.constant 0 : index
    %15 = vector.load %arg6[%c0_11, %c0_12] : memref<256x256xbf16, #tpu.memory_space<vmem>>, vector<256x256xbf16>
    %cst_13 = arith.constant dense<0.000000e+00> : vector<2x256xf32>
    %16 = tpu.matmul %14, %15, %cst_13 {dimension_numbers = #tpu.dot_dimension_numbers<[1], [0], [0], [1], [0, 0, 1, 1], [], []>} : vector<2x256xbf16>, vector<256x256xbf16>, vector<2x256xf32> -> vector<2x256xf32>
    %c0_14 = arith.constant 0 : index
    %c0_15 = arith.constant 0 : index
    %17 = vector.load %arg7[%c0_14, %c0_15] : memref<1x256xf32, #tpu.memory_space<vmem>>, vector<1x256xf32>
    %18 = vector.broadcast %17 : vector<1x256xf32> to vector<2x256xf32>
    %19 = arith.addf %16, %18 : vector<2x256xf32>
    %cst_16 = arith.constant 0.000000e+00 : f32
    %20 = vector.broadcast %cst_16 : f32 to vector<2x256xf32>
    %21 = arith.maximumf %19, %20 : vector<2x256xf32>
    %c0_17 = arith.constant 0 : index
    %c0_18 = arith.constant 0 : index
    %22 = vector.load %arg8[%c0_17, %c0_18] : memref<1x256xf32, #tpu.memory_space<vmem>>, vector<1x256xf32>
    %23 = vector.broadcast %22 : vector<1x256xf32> to vector<2x256xf32>
    %24 = arith.mulf %21, %23 : vector<2x256xf32>
    %cst_19 = arith.constant dense<0.000000e+00> : vector<2xf32>
    %25 = vector.multi_reduction <add>, %24, %cst_19 [1] : vector<2x256xf32> to vector<2xf32>
    %26 = vector.shape_cast %25 : vector<2xf32> to vector<2x1xf32>
    %c0_20 = arith.constant 0 : index
    %c0_21 = arith.constant 0 : index
    %27 = memref.load %arg9[%c0_20, %c0_21] : memref<1x1xf32, #tpu.memory_space<smem>>
    %28 = vector.broadcast %27 : f32 to vector<2x1xf32>
    %29 = arith.addf %26, %28 : vector<2x1xf32>
    %c0_22 = arith.constant 0 : index
    %c0_23 = arith.constant 0 : index
    %30 = vector.load %arg10[%c0_22, %c0_23] : memref<2x1xf32, #tpu.memory_space<vmem>>, vector<2x1xf32>
    tpu.vector_store %arg10[%c0_22, %c0_23], %29 {strides = array<i32>} : memref<2x1xf32, #tpu.memory_space<vmem>>, vector<2x1xf32>,
    return
  }
  func.func @transform_0(%arg0: i32) -> (i32, i32) {
    %c0_i32 = arith.constant 0 : i32
    %c0_i32_0 = arith.constant 0 : i32
    return %arg0, %c0_i32 : i32, i32
  }
  func.func @transform_1(%arg0: i32) -> (i32, i32) {
    %c0_i32 = arith.constant 0 : i32
    %c0_i32_0 = arith.constant 0 : i32
    return %arg0, %c0_i32 : i32, i32
  }
  func.func @transform_2(%arg0: i32) -> (i32, i32) {
    %c0_i32 = arith.constant 0 : i32
    %c0_i32_0 = arith.constant 0 : i32
    %c0_i32_1 = arith.constant 0 : i32
    return %c0_i32, %c0_i32_0 : i32, i32
  }
  func.func @transform_3(%arg0: i32) -> (i32, i32) {
    %c0_i32 = arith.constant 0 : i32
    %c0_i32_0 = arith.constant 0 : i32
    %c0_i32_1 = arith.constant 0 : i32
    return %c0_i32, %c0_i32_0 : i32, i32
  }
  func.func @transform_4(%arg0: i32) -> (i32, i32) {
    %c0_i32 = arith.constant 0 : i32
    %c0_i32_0 = arith.constant 0 : i32
    %c0_i32_1 = arith.constant 0 : i32
    return %c0_i32, %c0_i32_0 : i32, i32
  }
  func.func @transform_5(%arg0: i32) -> (i32, i32) {
    %c0_i32 = arith.constant 0 : i32
    %c0_i32_0 = arith.constant 0 : i32
    %c0_i32_1 = arith.constant 0 : i32
    return %c0_i32, %c0_i32_0 : i32, i32
  }
  func.func @transform_6(%arg0: i32) -> (i32, i32) {
    %c0_i32 = arith.constant 0 : i32
    %c0_i32_0 = arith.constant 0 : i32
    %c0_i32_1 = arith.constant 0 : i32
    return %c0_i32, %c0_i32_0 : i32, i32
  }
  func.func @transform_7(%arg0: i32) -> (i32, i32) {
    %c0_i32 = arith.constant 0 : i32
    %c0_i32_0 = arith.constant 0 : i32
    %c0_i32_1 = arith.constant 0 : i32
    return %c0_i32, %c0_i32_0 : i32, i32
  }
  func.func @transform_8(%arg0: i32) -> (i32, i32) {
    %c0_i32 = arith.constant 0 : i32
    %c0_i32_0 = arith.constant 0 : i32
    %c0_i32_1 = arith.constant 0 : i32
    return %c0_i32, %c0_i32_0 : i32, i32
  }
  func.func @transform_9(%arg0: i32) -> (i32, i32) {
    %c0_i32 = arith.constant 0 : i32
    %c0_i32_0 = arith.constant 0 : i32
    return %arg0, %c0_i32 : i32, i32
  }
}

</mosaic_0001>

<llo_original>
// kernel: tpu_custom_call.1
$region0: #{tpu_custom_call.1}
  #allocation0 [shape = 'u32[]', space=smem, size = 0x4, offset = 0x4, fixed_abs, tag = 'smem constant byte address 0x4 - core index']
  #allocation1 [shape = 'u32[72,128]{1,0:T(1,128)}', space=vmem, size = 0x9000, scoped, tag = 'internal scratch']
  #allocation2 [shape = 'f32[1,1]{1,0:T(1,128)S(6)}', space=smem, size = 0x200, scoped, tag = 'scoped memory for tpu_custom_call.1']
  %s0 = inlined_call_operand.hbm [shape: f32[2,8], index: 0, kind: input, shape index: {}]
  %s1 = inlined_call_operand.hbm [shape: f32[2,4], index: 1, kind: input, shape index: {}]
  %s2 = inlined_call_operand.hbm [shape: bf16[8,256], index: 2, kind: input, shape index: {}]
  %s3 = inlined_call_operand.vmem [shape: bf16[4,256], index: 3, kind: input, shape index: {}]
  %s4 = inlined_call_operand.hbm [shape: f32[1,256], index: 4, kind: input, shape index: {}]
  %s5 = inlined_call_operand.hbm [shape: bf16[256,256], index: 5, kind: input, shape index: {}]
  %s6 = inlined_call_operand.vmem [shape: f32[1,256], index: 6, kind: input, shape index: {}]
  %s7 = inlined_call_operand.vmem [shape: f32[1,256], index: 7, kind: input, shape index: {}]
  %s8 = inlined_call_operand.<no memory space> [shape: f32[1,1], index: 8, kind: input, shape index: {}]
  %s9 = inlined_call_operand.vmem [shape: f32[2,1], index: 9, kind: output, shape index: {}]
  %s10 = sld [smem:[#allocation0]]
  $region66: #{tpu_custom_call.1} parent=0
    _
  %s12 = ssub.s32 1, %s10
  %s13 = scalar_select 0, %s12, %s10
  %14 = sst [smem:[#allocation2]] %s8
  $region1: #{tpu_custom_call.1} parent=0
    #allocation3 [shape = 'u8[1024]{0}', space=vmem, size = 0x400, scoped, tag = 'input window, operand 0, single buffered']
    #allocation4 [shape = 's32[1]{0}', space=sflag, size = 0x4, scoped, tag = 'scoped memory for tpu_custom_call.1']
    #allocation5 [shape = 'u8[1024]{0}', space=vmem, size = 0x400, scoped, tag = 'input window, operand 1, single buffered']
    #allocation6 [shape = 's32[1]{0}', space=sflag, size = 0x4, scoped, tag = 'scoped memory for tpu_custom_call.1']
    #allocation7 [shape = 'u8[4096]{0}', space=vmem, size = 0x1000, scoped, tag = 'input window, operand 2, single buffered']
    #allocation8 [shape = 'u8[1024]{0}', space=vmem, size = 0x400, scoped, tag = 'input window, operand 4, single buffered']
    #allocation9 [shape = 's32[1]{0}', space=sflag, size = 0x4, scoped, tag = 'scoped memory for tpu_custom_call.1']
    #allocation10 [shape = 'u8[131072]{0}', space=vmem, size = 0x20000, scoped, tag = 'input window, operand 5, single buffered']
    %15 = vsyncpa [#allocation4], 0
    %16 = vsyncpa [#allocation6], 0
    %17 = vsyncpa [#allocation9], 0
    // Predicated region
    $region2: #{tpu_custom_call.1} parent=1 // pred_check
      _
    $region3: #{tpu_custom_call.1} parent=1 // pred_check_branch
      %19 = sbr.rel (0) target = $region5
    $region4: #{tpu_custom_call.1} parent=1 // pred_region
      %21 = vsyncadd [#allocation4], 0
      %s23 = sshll.u32 %s0, 4
      %s24 = int_to_ptr.hbm [resolvable:$true] %s23
      %s25 = sshll.u32 [#allocation3], 4
      %s26 = int_to_ptr.vmem [resolvable:$true] %s25
      %28 = dma.hbm_to_vmem [thread:$0]  %s24, 32, %s26, [#allocation4]
    $region5: #{tpu_custom_call.1} parent=1 // pred_fallthru
      _
    // Predicated region
    $region6: #{tpu_custom_call.1} parent=1 // pred_check
      _
    $region7: #{tpu_custom_call.1} parent=1 // pred_check_branch
      %30 = sbr.rel (0) target = $region9
    $region8: #{tpu_custom_call.1} parent=1 // pred_region
      %32 = vsyncadd [#allocation6], 0
      %s34 = sshll.u32 %s1, 4
      %s35 = int_to_ptr.hbm [resolvable:$true] %s34
      %s36 = sshll.u32 [#allocation5], 4
      %s37 = int_to_ptr.vmem [resolvable:$true] %s36
      %39 = dma.hbm_to_vmem [thread:$0]  %s35, 32, %s37, [#allocation6]
    $region9: #{tpu_custom_call.1} parent=1 // pred_fallthru
      _
    // Predicated region
    $region10: #{tpu_custom_call.1} parent=1 // pred_check
      _
    $region11: #{tpu_custom_call.1} parent=1 // pred_check_branch
      %41 = sbr.rel (0) target = $region13
    $region12: #{tpu_custom_call.1} parent=1 // pred_region
      %43 = vsyncadd [#allocation6], 0
      %s45 = sshll.u32 %s2, 4
      %s46 = int_to_ptr.hbm [resolvable:$true] %s45
      %s47 = sshll.u32 [#allocation7], 4
      %s48 = int_to_ptr.vmem [resolvable:$true] %s47
      %50 = dma.hbm_to_vmem [thread:$0]  %s46, 128, %s48, [#allocation6]
    $region13: #{tpu_custom_call.1} parent=1 // pred_fallthru
      _
    // Predicated region
    $region14: #{tpu_custom_call.1} parent=1 // pred_check
      _
    $region15: #{tpu_custom_call.1} parent=1 // pred_check_branch
      %52 = sbr.rel (0) target = $region17
    $region16: #{tpu_custom_call.1} parent=1 // pred_region
      _
    $region17: #{tpu_custom_call.1} parent=1 // pred_fallthru
      _
    // Predicated region
    $region18: #{tpu_custom_call.1} parent=1 // pred_check
      _
    $region19: #{tpu_custom_call.1} parent=1 // pred_check_branch
      %54 = sbr.rel (0) target = $region21
    $region20: #{tpu_custom_call.1} parent=1 // pred_region
      %56 = vsyncadd [#allocation9], 0
      %s58 = sshll.u32 %s4, 4
      %s59 = int_to_ptr.hbm [resolvable:$true] %s58
      %s60 = sshll.u32 [#allocation8], 4
      %s61 = int_to_ptr.vmem [resolvable:$true] %s60
      %63 = dma.hbm_to_vmem [thread:$0]  %s59, 32, %s61, [#allocation9]
    $region21: #{tpu_custom_call.1} parent=1 // pred_fallthru
      _
    // Predicated region
    $region22: #{tpu_custom_call.1} parent=1 // pred_check
      _
    $region23: #{tpu_custom_call.1} parent=1 // pred_check_branch
      %65 = sbr.rel (0) target = $region25
    $region24: #{tpu_custom_call.1} parent=1 // pred_region
      %67 = vsyncadd [#allocation9], 0
      %s68 = sshll.u32 %s5, 4
      %s69 = int_to_ptr.hbm [resolvable:$true] %s68
      %s70 = sshll.u32 [#allocation10], 4
      %s71 = int_to_ptr.vmem [resolvable:$true] %s70
      %76 = dma.hbm_to_vmem [thread:$0]  %s69, 4096, %s71, [#allocation9], 128, 128, 8
    $region25: #{tpu_custom_call.1} parent=1 // pred_fallthru
      _
    // Predicated region
    $region26: #{tpu_custom_call.1} parent=1 // pred_check
      _
    $region27: #{tpu_custom_call.1} parent=1 // pred_check_branch
      %78 = sbr.rel (0) target = $region29
    $region28: #{tpu_custom_call.1} parent=1 // pred_region
      _
    $region29: #{tpu_custom_call.1} parent=1 // pred_fallthru
      _
    // Predicated region
    $region30: #{tpu_custom_call.1} parent=1 // pred_check
      _
    $region31: #{tpu_custom_call.1} parent=1 // pred_check_branch
      %80 = sbr.rel (0) target = $region33
    $region32: #{tpu_custom_call.1} parent=1 // pred_region
      _
    $region33: #{tpu_custom_call.1} parent=1 // pred_fallthru
      _
    // Predicated region
    $region34: #{tpu_custom_call.1} parent=1 // pred_check
      _
    $region35: #{tpu_custom_call.1} parent=1 // pred_check_branch
      %82 = sbr.rel (0) target = $region37
    $region36: #{tpu_custom_call.1} parent=1 // pred_region
      _
    $region37: #{tpu_custom_call.1} parent=1 // pred_fallthru
      _
    // Predicated region
    $region38: #{tpu_custom_call.1} parent=1 // pred_check
      _
    $region39: #{tpu_custom_call.1} parent=1 // pred_check_branch
      %84 = sbr.rel (0) target = $region41
    $region40: #{tpu_custom_call.1} parent=1 // pred_region
      %86 = dma.done [#allocation4], 32
    $region41: #{tpu_custom_call.1} parent=1 // pred_fallthru
      _
    // Predicated region
    $region42: #{tpu_custom_call.1} parent=1 // pred_check
      _
    $region43: #{tpu_custom_call.1} parent=1 // pred_check_branch
      %88 = sbr.rel (0) target = $region45
    $region44: #{tpu_custom_call.1} parent=1 // pred_region
      %90 = dma.done [#allocation6], 32
    $region45: #{tpu_custom_call.1} parent=1 // pred_fallthru
      _
    // Predicated region
    $region46: #{tpu_custom_call.1} parent=1 // pred_check
      _
    $region47: #{tpu_custom_call.1} parent=1 // pred_check_branch
      %92 = sbr.rel (0) target = $region49
    $region48: #{tpu_custom_call.1} parent=1 // pred_region
      %94 = dma.done [#allocation6], 128
    $region49: #{tpu_custom_call.1} parent=1 // pred_fallthru
      _
    // Predicated region
    $region50: #{tpu_custom_call.1} parent=1 // pred_check
      _
    $region51: #{tpu_custom_call.1} parent=1 // pred_check_branch
      %96 = sbr.rel (0) target = $region53
    $region52: #{tpu_custom_call.1} parent=1 // pred_region
      %98 = dma.done [#allocation9], 32
    $region53: #{tpu_custom_call.1} parent=1 // pred_fallthru
      _
    // Predicated region
    $region54: #{tpu_custom_call.1} parent=1 // pred_check
      _
    $region55: #{tpu_custom_call.1} parent=1 // pred_check_branch
      %100 = sbr.rel (0) target = $region57
    $region56: #{tpu_custom_call.1} parent=1 // pred_region
      %102 = dma.done [#allocation9], 4096
    $region57: #{tpu_custom_call.1} parent=1 // pred_fallthru
      _
    %v104 = vld [vmem:[#allocation3] sm:$0x3]
    %v105 = vpack.c.bf16 %v104, %v104
    %v106 = vld [vmem:[#allocation5] sm:$0x3]
    %v107 = vpack.c.bf16 %v106, %v106
    %v108 = vld [vmem:[#allocation7] sm:$0xff]
    %v109 = vld [vmem:[%s3] sm:$0xf]
    %111 = vst [vmem:[#allocation1] ss:$4 sm:$0xff] %v109
    %v112 = vld.sshfl [vmem:[#allocation1] sm:$0xff pattern:$0x73625140]
    %v113 = vld.sshfl [vmem:[#allocation1 + $0x8] sm:$0xff pattern:$0x73625140]
    %vm114 = vcmask 31744
    %v116 = vsel %vm114, %v107, 0
    %vm118 = vcmask 1041408
    %v119 = vsel %vm118, %v112, 0
    %v121 = vsel %vm118, %v113, 0
    %123 = vmatpush.bf16.msra.mxu0 0
    %124 = vmatpush.bf16.msra.mxu0 0
    %125 = vmatpush.bf16.msra.mxu0 0
    %126 = vmatpush.bf16.msra.mxu0 0
    %127 = vmatpush.bf16.msra.mxu0 0
    %128 = vmatpush.bf16.msra.mxu0 0
    %129 = vmatpush.bf16.msra.mxu0 0
    %130 = vmatpush.bf16.msra.mxu0 %v119
    %131 = vmatmul.bf16.gmra.mxu0 %v116
    %v132 = vpop.f32.mrf.mxu0
    %v133 = vadd.f32 0.0, %v132
    %v134 = vpop.f32.mrf.mxu0
    %135 = vdwg.mxu0
    %136 = vmatpush.bf16.msra.mxu0 0
    %137 = vmatpush.bf16.msra.mxu0 0
    %138 = vmatpush.bf16.msra.mxu0 0
    %139 = vmatpush.bf16.msra.mxu0 0
    %140 = vmatpush.bf16.msra.mxu0 0
    %141 = vmatpush.bf16.msra.mxu0 0
    %142 = vmatpush.bf16.msra.mxu0 0
    %143 = vmatpush.bf16.msra.mxu0 %v121
    %144 = vmatmul.bf16.gmra.mxu0 %v116
    %v145 = vpop.f32.mrf.mxu0
    %v146 = vadd.f32 0.0, %v145
    %v147 = vpop.f32.mrf.mxu0
    %148 = vdwg.mxu0
    %v150 = vunpack.c.l.b16 %v108
    %v151 = vunpack.c.h.b16 %v108
    %v152 = vpack.c.b16 %v150, %v150
    %v153 = vpack.c.b16 %v151, %v151
    %vm154 = vcmask 64512
    %v156 = vsel %vm154, %v105, 0
    %vm158 = vcmask 1043456
    %v160 = vsel %vm158, %v152, 0
    %v163 = vsel %vm158, %v153, 0
    %165 = vmatpush.bf16.msra.mxu0 0
    %166 = vmatpush.bf16.msra.mxu0 0
    %167 = vmatpush.bf16.msra.mxu0 0
    %168 = vmatpush.bf16.msra.mxu0 0
    %169 = vmatpush.bf16.msra.mxu0 0
    %170 = vmatpush.bf16.msra.mxu0 0
    %171 = vmatpush.bf16.msra.mxu0 0
    %172 = vmatpush.bf16.msra.mxu0 %v160
    %173 = vmatmul.bf16.gmra.mxu0 %v156
    %v174 = vpop.f32.mrf.mxu0
    %v175 = vadd.f32 %v133, %v174
    %v176 = vpop.f32.mrf.mxu0
    %177 = vdwg.mxu0
    %178 = vmatpush.bf16.msra.mxu0 0
    %179 = vmatpush.bf16.msra.mxu0 0
    %180 = vmatpush.bf16.msra.mxu0 0
    %181 = vmatpush.bf16.msra.mxu0 0
    %182 = vmatpush.bf16.msra.mxu0 0
    %183 = vmatpush.bf16.msra.mxu0 0
    %184 = vmatpush.bf16.msra.mxu0 0
    %185 = vmatpush.bf16.msra.mxu0 %v163
    %186 = vmatmul.bf16.gmra.mxu0 %v156
    %v187 = vpop.f32.mrf.mxu0
    %v188 = vadd.f32 %v146, %v187
    %v189 = vpop.f32.mrf.mxu0
    %190 = vdwg.mxu0
    %v191 = vld [vmem:[#allocation8] sm:$0x3]
    %v193 = vperm.slane %v191, 0
    %v194 = vperm.slane %v191, 1
    %v197 = vadd.f32 %v175, %v193
    %v198 = vadd.f32 %v188, %v194
    %v199 = vmax.f32 %v197, 0.0
    %v200 = vmax.f32 %v198, 0.0
    %v201 = vpack.c.bf16 %v199, %v199
    %v202 = vpack.c.bf16 %v200, %v200
    %v203 = vld [vmem:[#allocation10] sm:$0xff]
    %v204 = vld [vmem:[#allocation10 + $0x8] sm:$0xff]
    %v205 = vld [vmem:[#allocation10 + $0x10] sm:$0xff]
    %v206 = vld [vmem:[#allocation10 + $0x18] sm:$0xff]
    %v207 = vld [vmem:[#allocation10 + $0x20] sm:$0xff]
    %v208 = vld [vmem:[#allocation10 + $0x28] sm:$0xff]
    %v209 = vld [vmem:[#allocation10 + $0x30] sm:$0xff]
    %v210 = vld [vmem:[#allocation10 + $0x38] sm:$0xff]
    %v211 = vld [vmem:[#allocation10 + $0x40] sm:$0xff]
    %v212 = vld [vmem:[#allocation10 + $0x48] sm:$0xff]
    %v213 = vld [vmem:[#allocation10 + $0x50] sm:$0xff]
    %v214 = vld [vmem:[#allocation10 + $0x58] sm:$0xff]
    %v215 = vld [vmem:[#allocation10 + $0x60] sm:$0xff]
    %v216 = vld [vmem:[#allocation10 + $0x68] sm:$0xff]
    %v217 = vld [vmem:[#allocation10 + $0x70] sm:$0xff]
    %v218 = vld [vmem:[#allocation10 + $0x78] sm:$0xff]
    %v219 = vld [vmem:[#allocation10 + $0x80] sm:$0xff]
    %v220 = vld [vmem:[#allocation10 + $0x88] sm:$0xff]
    %v221 = vld [vmem:[#allocation10 + $0x90] sm:$0xff]
    %v222 = vld [vmem:[#allocation10 + $0x98] sm:$0xff]
    %v223 = vld [vmem:[#allocation10 + $0xa0] sm:$0xff]
    %v224 = vld [vmem:[#allocation10 + $0xa8] sm:$0xff]
    %v225 = vld [vmem:[#allocation10 + $0xb0] sm:$0xff]
    %v226 = vld [vmem:[#allocation10 + $0xb8] sm:$0xff]
    %v227 = vld [vmem:[#allocation10 + $0xc0] sm:$0xff]
    %v228 = vld [vmem:[#allocation10 + $0xc8] sm:$0xff]
    %v229 = vld [vmem:[#allocation10 + $0xd0] sm:$0xff]
    %v230 = vld [vmem:[#allocation10 + $0xd8] sm:$0xff]
    %v231 = vld [vmem:[#allocation10 + $0xe0] sm:$0xff]
    %v232 = vld [vmem:[#allocation10 + $0xe8] sm:$0xff]
    %v233 = vld [vmem:[#allocation10 + $0xf0] sm:$0xff]
    %v234 = vld [vmem:[#allocation10 + $0xf8] sm:$0xff]
    %v235 = vld [vmem:[%s6] sm:$0x3]
    %v237 = vperm.slane %v235, 0
    %v238 = vperm.slane %v235, 1
    %v273 = vunpack.c.l.b16 %v203
    %v274 = vunpack.c.h.b16 %v203
    %v275 = vunpack.c.l.b16 %v204
    %v276 = vunpack.c.h.b16 %v204
    %v277 = vunpack.c.l.b16 %v205
    %v278 = vunpack.c.h.b16 %v205
    %v279 = vunpack.c.l.b16 %v206
    %v280 = vunpack.c.h.b16 %v206
    %v281 = vunpack.c.l.b16 %v207
    %v282 = vunpack.c.h.b16 %v207
    %v283 = vunpack.c.l.b16 %v208
    %v284 = vunpack.c.h.b16 %v208
    %v285 = vunpack.c.l.b16 %v209
    %v286 = vunpack.c.h.b16 %v209
    %v287 = vunpack.c.l.b16 %v210
    %v288 = vunpack.c.h.b16 %v210
    %v289 = vunpack.c.l.b16 %v211
    %v290 = vunpack.c.h.b16 %v211
    %v291 = vunpack.c.l.b16 %v212
    %v292 = vunpack.c.h.b16 %v212
    %v293 = vunpack.c.l.b16 %v213
    %v294 = vunpack.c.h.b16 %v213
    %v295 = vunpack.c.l.b16 %v214
    %v296 = vunpack.c.h.b16 %v214
    %v297 = vunpack.c.l.b16 %v215
    %v298 = vunpack.c.h.b16 %v215
    %v299 = vunpack.c.l.b16 %v216
    %v300 = vunpack.c.h.b16 %v216
    %v301 = vunpack.c.l.b16 %v217
    %v302 = vunpack.c.h.b16 %v217
    %v303 = vunpack.c.l.b16 %v218
    %v304 = vunpack.c.h.b16 %v218
    %v305 = vunpack.c.l.b16 %v219
    %v306 = vunpack.c.h.b16 %v219
    %v307 = vunpack.c.l.b16 %v220
    %v308 = vunpack.c.h.b16 %v220
    %v309 = vunpack.c.l.b16 %v221
    %v310 = vunpack.c.h.b16 %v221
    %v311 = vunpack.c.l.b16 %v222
    %v312 = vunpack.c.h.b16 %v222
    %v313 = vunpack.c.l.b16 %v223
    %v314 = vunpack.c.h.b16 %v223
    %v315 = vunpack.c.l.b16 %v224
    %v316 = vunpack.c.h.b16 %v224
    %v317 = vunpack.c.l.b16 %v225
    %v318 = vunpack.c.h.b16 %v225
    %v319 = vunpack.c.l.b16 %v226
    %v320 = vunpack.c.h.b16 %v226
    %v321 = vunpack.c.l.b16 %v227
    %v322 = vunpack.c.h.b16 %v227
    %v323 = vunpack.c.l.b16 %v228
    %v324 = vunpack.c.h.b16 %v228
    %v325 = vunpack.c.l.b16 %v229
    %v326 = vunpack.c.h.b16 %v229
    %v327 = vunpack.c.l.b16 %v230
    %v328 = vunpack.c.h.b16 %v230
    %v329 = vunpack.c.l.b16 %v231
    %v330 = vunpack.c.h.b16 %v231
    %v331 = vunpack.c.l.b16 %v232
    %v332 = vunpack.c.h.b16 %v232
    %v333 = vunpack.c.l.b16 %v233
    %v334 = vunpack.c.h.b16 %v233
    %v335 = vunpack.c.l.b16 %v234
    %v336 = vunpack.c.h.b16 %v234
    %v337 = vpack.c.b16 %v275, %v273
    %v338 = vpack.c.b16 %v276, %v274
    %v339 = vpack.c.b16 %v279, %v277
    %v340 = vpack.c.b16 %v280, %v278
    %v341 = vpack.c.b16 %v283, %v281
    %v342 = vpack.c.b16 %v284, %v282
    %v343 = vpack.c.b16 %v287, %v285
    %v344 = vpack.c.b16 %v288, %v286
    %v345 = vpack.c.b16 %v291, %v289
    %v346 = vpack.c.b16 %v292, %v290
    %v347 = vpack.c.b16 %v295, %v293
    %v348 = vpack.c.b16 %v296, %v294
    %v349 = vpack.c.b16 %v299, %v297
    %v350 = vpack.c.b16 %v300, %v298
    %v351 = vpack.c.b16 %v303, %v301
    %v352 = vpack.c.b16 %v304, %v302
    %v353 = vpack.c.b16 %v307, %v305
    %v354 = vpack.c.b16 %v308, %v306
    %v355 = vpack.c.b16 %v311, %v309
    %v356 = vpack.c.b16 %v312, %v310
    %v357 = vpack.c.b16 %v315, %v313
    %v358 = vpack.c.b16 %v316, %v314
    %v359 = vpack.c.b16 %v319, %v317
    %v360 = vpack.c.b16 %v320, %v318
    %v361 = vpack.c.b16 %v323, %v321
    %v362 = vpack.c.b16 %v324, %v322
    %v363 = vpack.c.b16 %v327, %v325
    %v364 = vpack.c.b16 %v328, %v326
    %v365 = vpack.c.b16 %v331, %v329
    %v366 = vpack.c.b16 %v332, %v330
    %v367 = vpack.c.b16 %v335, %v333
    %v368 = vpack.c.b16 %v336, %v334
    %401 = vmatpush.bf16.msra.mxu0 %v351
    %402 = vmatpush.bf16.msra.mxu0 %v349
    %403 = vmatpush.bf16.msra.mxu0 %v347
    %404 = vmatpush.bf16.msra.mxu0 %v345
    %405 = vmatpush.bf16.msra.mxu0 %v343
    %406 = vmatpush.bf16.msra.mxu0 %v341
    %407 = vmatpush.bf16.msra.mxu0 %v339
    %408 = vmatpush.bf16.msra.mxu0 %v337
    %409 = vmatmul.bf16.gmra.mxu0 %v201
    %v410 = vpop.f32.mrf.mxu0
    %v411 = vadd.f32 %v237, %v410
    %v412 = vpop.f32.mrf.mxu0
    %413 = vdwg.mxu0
    %414 = vmatpush.bf16.msra.mxu0 %v367
    %415 = vmatpush.bf16.msra.mxu0 %v365
    %416 = vmatpush.bf16.msra.mxu0 %v363
    %417 = vmatpush.bf16.msra.mxu0 %v361
    %418 = vmatpush.bf16.msra.mxu0 %v359
    %419 = vmatpush.bf16.msra.mxu0 %v357
    %420 = vmatpush.bf16.msra.mxu0 %v355
    %421 = vmatpush.bf16.msra.mxu0 %v353
    %422 = vmatmul.bf16.gmra.mxu0 %v202
    %v423 = vpop.f32.mrf.mxu0
    %v424 = vadd.f32 %v411, %v423
    %v425 = vpop.f32.mrf.mxu0
    %426 = vdwg.mxu0
    %427 = vmatpush.bf16.msra.mxu0 %v352
    %428 = vmatpush.bf16.msra.mxu0 %v350
    %429 = vmatpush.bf16.msra.mxu0 %v348
    %430 = vmatpush.bf16.msra.mxu0 %v346
    %431 = vmatpush.bf16.msra.mxu0 %v344
    %432 = vmatpush.bf16.msra.mxu0 %v342
    %433 = vmatpush.bf16.msra.mxu0 %v340
    %434 = vmatpush.bf16.msra.mxu0 %v338
    %435 = vmatmul.bf16.gmra.mxu0 %v201
    %v436 = vpop.f32.mrf.mxu0
    %v437 = vadd.f32 %v238, %v436
    %v438 = vpop.f32.mrf.mxu0
    %439 = vdwg.mxu0
    %440 = vmatpush.bf16.msra.mxu0 %v368
    %441 = vmatpush.bf16.msra.mxu0 %v366
    %442 = vmatpush.bf16.msra.mxu0 %v364
    %443 = vmatpush.bf16.msra.mxu0 %v362
    %444 = vmatpush.bf16.msra.mxu0 %v360
    %445 = vmatpush.bf16.msra.mxu0 %v358
    %446 = vmatpush.bf16.msra.mxu0 %v356
    %447 = vmatpush.bf16.msra.mxu0 %v354
    %448 = vmatmul.bf16.gmra.mxu0 %v202
    %v449 = vpop.f32.mrf.mxu0
    %v450 = vadd.f32 %v437, %v449
    %v451 = vpop.f32.mrf.mxu0
    %452 = vdwg.mxu0
    %v453 = vmax.f32 %v424, 0.0
    %v454 = vmax.f32 %v450, 0.0
    %v455 = vld [vmem:[%s7] sm:$0x3]
    %v457 = vperm.slane %v455, 0
    %v458 = vperm.slane %v455, 1
    %v461 = vmul.f32 %v453, %v457
    %v462 = vmul.f32 %v454, %v458
    %v463 = vsel %vm118, %v461, 0.0
    %v464 = vsel %vm118, %v462, 0.0
    %v465 = vadd.f32 %v463, %v464
    %466 = vadd.xlane.f32.xlu0 %v465
    %v467 = vpop.xlane.xlu0 %466
    %s468 = sld [smem:[#allocation2]]
    %v469 = vstv %s468
    %v470 = vadd.f32 %v467, %v469
    %vm471 = vcmask 1024
    %472 = vst.msk [vmem:[%s9] sm:$0x3] %vm471, %v470
    // Predicated region
    $region58: #{tpu_custom_call.1} parent=1 // pred_check
      _
    $region59: #{tpu_custom_call.1} parent=1 // pred_check_branch
      %474 = sbr.rel (0) target = $region61
    $region60: #{tpu_custom_call.1} parent=1 // pred_region
      _
    $region61: #{tpu_custom_call.1} parent=1 // pred_fallthru
      _
    // Predicated region
    $region62: #{tpu_custom_call.1} parent=1 // pred_check
      _
    $region63: #{tpu_custom_call.1} parent=1 // pred_check_branch
      %476 = sbr.rel (0) target = $region65
    $region64: #{tpu_custom_call.1} parent=1 // pred_region
      _
    $region65: #{tpu_custom_call.1} parent=1 // pred_fallthru
      _
    %477 = vsyncpa [#allocation4], 1
    %478 = vsyncpa [#allocation6], 1
    %479 = vsyncpa [#allocation9], 1

</llo_original>
